<compile_context>
chip_gen: v7x
topology: tpu7x:2x2x1
jax: 0.10.0
libtpu: 0.0.40
codegen_flags: <defaults>
</compile_context>

<pallas_src>
import math

import jax
import jax.numpy as jnp
from jax.experimental import pallas as pl
from jax.experimental.pallas import tpu as pltpu


def _attn_probs_kernel(q_ref, kt_ref, bias_ref, out_ref):
    # q_ref:    (1, 1, TQ, d_k)  bf16, 1/sqrt(d_k) pre-folded
    # kt_ref:   (1, 1, d_k, Lk)  bf16, pre-transposed (k^T)
    # bias_ref: (1, TQ, Lk)      bf16 additive mask (0 / -1e9)
    # out_ref:  (1, 1, TQ, Lk)   f32 attention probabilities

    # Canonical MXU matmul (bf16 inputs, f32 accumulate); no transpose needed.
    s = jnp.dot(q_ref[0, 0], kt_ref[0, 0],
                preferred_element_type=jnp.float32)          # (TQ, Lk)
    s = s + bias_ref[0].astype(jnp.float32)                  # additive mask

    # Numerically stable softmax; divide moved onto the EUP reciprocal slot.
    m = jnp.max(s, axis=-1, keepdims=True)
    e = jnp.exp(s - m)
    denom = jnp.sum(e, axis=-1, keepdims=True)
    p = e * pl.reciprocal(denom, approx=True)

    # TODO(synk): nn.Dropout(p=0.1) on p_attn is omitted (eval-mode identity).
    out_ref[0, 0] = p.astype(out_ref.dtype)


def _vmem_limit_bytes():
    """Generation-aware scoped-VMEM limit (v5e/v6e: 128 MiB phys, v7x: 64 MiB)."""
    cap = None
    try:
        cap = getattr(pltpu.get_tpu_info(), "vmem_capacity_bytes", None)
    except Exception:
        cap = None
    if cap:
        return int(min(0.8 * cap, 100 * 1024 * 1024))
    return 32 * 1024 * 1024   # conservative fallback if the query is unavailable


def multi_head_attention(query, key, mask, wq, bq, wk, bk, *, h, q_tile=None):
    """query/key: (B, L, D) f32; mask: (B, Lq, Lk) int or None; wq/wk: (D, D)
    PyTorch (out, in) layout; returns (B, h, Lq, Lk) f32 attention probs."""
    B, Lq, D = query.shape
    _, Lk, _ = key.shape
    assert D % h == 0
    d_k = D // h
    scale = 1.0 / math.sqrt(d_k)
    bf = jnp.bfloat16

    # ---- Host/XLA-side prep -------------------------------------------------
    # One lane-full (B*L, D) x (D, D) GEMM per projection, bf16 in / f32 acc.
    # Done once; the kernel never recomputes them per q-tile.
    qp = jnp.dot(query.astype(bf), wq.T.astype(bf),
                 preferred_element_type=jnp.float32) + bq[None, None, :]
    kp = jnp.dot(key.astype(bf), wk.T.astype(bf),
                 preferred_element_type=jnp.float32) + bk[None, None, :]
    qp = qp * scale                                   # fold 1/sqrt(d_k) into q

    # Per-head split; k pre-transposed so the in-kernel score matmul is the
    # canonical (TQ, d_k) @ (d_k, Lk) — no per-step XLU transpose.
    qh = qp.reshape(B, Lq, h, d_k).transpose(0, 2, 1, 3).astype(bf)   # (B,h,Lq,d_k)
    khT = kp.reshape(B, Lk, h, d_k).transpose(0, 2, 3, 1).astype(bf)  # (B,h,d_k,Lk)

    # Additive mask bias in bf16 (half the HBM traffic of f32; -1e9 rounds to
    # ~-1.002e9 which still underflows to probability 0 after softmax).
    if mask is None:
        bias = jnp.zeros((B, Lq, Lk), dtype=bf)
    else:
        bias = jnp.where(mask == 0, -1e9, 0.0).astype(bf)

    # Pad Lk to a multiple of 128 for lane-dense output stores; padded key
    # columns receive bias -1e9 (zero probability) and are sliced off below.
    Lk_pad = ((Lk + 127) // 128) * 128
    if Lk_pad != Lk:
        khT = jnp.pad(khT, ((0, 0), (0, 0), (0, 0), (0, Lk_pad - Lk)))
        bias = jnp.pad(bias, ((0, 0), (0, 0), (0, Lk_pad - Lk)),
                       constant_values=-1e9)

    vmem_limit = _vmem_limit_bytes()

    # ---- q-tile selection ---------------------------------------------------
    if q_tile is None:
        # Largest tile dividing Lq whose double-buffered working set stays
        # well inside the scoped-VMEM limit (out f32 + bias/q/kT bf16).
        for cand in (Lq, 1024, 512, 256, 128, 64, 32, 16):
            if cand > Lq or Lq % cand or (cand != Lq and cand % 16):
                continue
            need = 2 * (cand * Lk_pad * 4          # out  (f32)
                        + cand * Lk_pad * 2        # bias (bf16)
                        + cand * d_k * 2           # q    (bf16)
                        + d_k * Lk_pad * 2)        # kT   (bf16)
            if need <= 0.6 * vmem_limit:
                q_tile = cand
                break
        if q_tile is None:
            q_tile = 16 if Lq % 16 == 0 else Lq
    assert Lq % q_tile == 0, "Lq must be divisible by q_tile"
    assert q_tile == Lq or q_tile % 16 == 0, \
        "q_tile < Lq must be a multiple of 16 (bf16 sublane packing)"
    n_qt = Lq // q_tile

    # Heads innermost: the bias block index is head-invariant, so Pallas skips
    # its re-DMA across the inner axis; per-head q / kT blocks are small.
    grid = (B, n_qt, h)

    flops = 2 * B * h * Lq * Lk_pad * d_k                 # score matmul only
    bytes_accessed = (4 * B * h * Lq * Lk_pad             # output probabilities
                      + 2 * B * Lq * Lk_pad               # bias (bf16)
                      + 2 * B * h * Lq * d_k              # q (bf16)
                      + 2 * n_qt * B * h * d_k * Lk_pad)  # kT, re-fetched per q-tile
    cost = pl.CostEstimate(flops=int(flops),
                           transcendentals=int(B * h * Lq * Lk_pad),
                           bytes_accessed=int(bytes_accessed))

    out = pl.pallas_call(
        _attn_probs_kernel,
        out_shape=jax.ShapeDtypeStruct((B, h, Lq, Lk_pad), jnp.float32),
        grid=grid,
        in_specs=[
            pl.BlockSpec((1, 1, q_tile, d_k), lambda b, t, i: (b, i, t, 0)),  # q
            pl.BlockSpec((1, 1, d_k, Lk_pad), lambda b, t, i: (b, i, 0, 0)),  # k^T
            pl.BlockSpec((1, q_tile, Lk_pad), lambda b, t, i: (b, t, 0)),     # bias
        ],
        out_specs=pl.BlockSpec((1, 1, q_tile, Lk_pad),
                               lambda b, t, i: (b, i, t, 0)),
        compiler_params=pltpu.CompilerParams(
            # Head axis kept "arbitrary" so a megacore split (v7x) lands on B
            # or the q-tile axis and does not break bias-block reuse.
            dimension_semantics=("parallel", "parallel", "arbitrary"),
            vmem_limit_bytes=vmem_limit),
        cost_estimate=cost,
    )(qh, khT, bias)

    if Lk_pad != Lk:
        out = out[..., :Lk]
    # TODO(synk): emit bf16 probabilities (and/or fuse p @ V flash-style) if the
    # consumer tolerates it — the f32 (B,h,Lq,Lk) store is the dominant HBM cost.
    return out


def _reference(query, key, mask, wq, bq, wk, bk, h):
    """Plain-JAX f32 reference mirroring the PyTorch forward."""
    B, L, D = query.shape
    d_k = D // h
    qp = query @ wq.T + bq
    kp = key @ wk.T + bk
    qh = qp.reshape(B, L, h, d_k).transpose(0, 2, 1, 3)
    kh = kp.reshape(B, L, h, d_k).transpose(0, 2, 1, 3)
    scores = jnp.einsum('bhqd,bhkd->bhqk', qh, kh) / math.sqrt(d_k)
    scores = jnp.where(mask[:, None, :, :] == 0, -1e9, scores)
    return jax.nn.softmax(scores, axis=-1)


if __name__ == "__main__":
    B, L, d_model, h = 2, 8, 32, 4

    key0 = jax.random.PRNGKey(0)
    k_q, k_k, k_wq, k_bq, k_wk, k_bk, k_m = jax.random.split(key0, 7)

    query = jax.random.normal(k_q, (B, L, d_model), dtype=jnp.float32)
    key_in = jax.random.normal(k_k, (B, L, d_model), dtype=jnp.float32)

    # nn.Linear default init: U(-1/sqrt(in), 1/sqrt(in)) — deterministic here.
    bound = 1.0 / math.sqrt(d_model)
    wq = jax.random.uniform(k_wq, (d_model, d_model), jnp.float32, -bound, bound)
    bq = jax.random.uniform(k_bq, (d_model,), jnp.float32, -bound, bound)
    wk = jax.random.uniform(k_wk, (d_model, d_model), jnp.float32, -bound, bound)
    bk = jax.random.uniform(k_bk, (d_model,), jnp.float32, -bound, bound)

    mask = (jax.random.uniform(k_m, (B, L, L)) > 0.3).astype(jnp.int32)
    # Avoid fully-masked rows (degenerate in the PyTorch module as well).
    mask = jnp.maximum(mask, jnp.eye(L, dtype=jnp.int32)[None])

    out = multi_head_attention(query, key_in, mask, wq, bq, wk, bk, h=h)
    out = jax.block_until_ready(out)

    ref = _reference(query, key_in, mask, wq, bq, wk, bk, h)
    assert out.shape == (B, h, L, L)
    # bf16 MXU inputs (projection + score matmul) + EUP approx reciprocal in
    # the softmax denominator -> looser tolerance vs. the pure-f32 reference.
    err = float(jnp.max(jnp.abs(out - ref)))
    assert jnp.allclose(out, ref, atol=2e-2, rtol=2e-2), err

    print("KERNEL_OK")
</pallas_src>

<mosaic_0001>
module attributes {stable_mosaic.version = 11 : i64} {
  func.func @_attn_probs_kernel(%arg0: i32, %arg1: i32, %arg2: i32, %arg3: memref<1x1x8x8xbf16, #tpu.memory_space<vmem>>, %arg4: memref<1x1x8x128xbf16, #tpu.memory_space<vmem>>, %arg5: memref<1x8x128xbf16, #tpu.memory_space<vmem>>, %arg6: memref<1x1x8x128xf32, #tpu.memory_space<vmem>>) attributes {dimension_semantics = [#tpu.dimension_semantics<parallel>, #tpu.dimension_semantics<parallel>, #tpu.dimension_semantics<arbitrary>], iteration_bounds = array<i64: 2, 1, 4>, scalar_prefetch = 0 : i64, scratch_operands = 0 : i64, tpu.core_type = #tpu.core_type<tc>, window_params = [{transform_indices = @transform_0, window_bounds = array<i64: 1, 1, 8, 8>}, {transform_indices = @transform_1, window_bounds = array<i64: 1, 1, 8, 128>}, {transform_indices = @transform_2, window_bounds = array<i64: 1, 8, 128>}, {transform_indices = @transform_3, window_bounds = array<i64: 1, 1, 8, 128>}]} {
    %c0 = arith.constant 0 : index
    %c0_0 = arith.constant 0 : index
    %c0_1 = arith.constant 0 : index
    %c0_2 = arith.constant 0 : index
    %0 = vector.load %arg3[%c0, %c0_0, %c0_1, %c0_2] : memref<1x1x8x8xbf16, #tpu.memory_space<vmem>>, vector<1x1x8x8xbf16>
    %1 = vector.shape_cast %0 : vector<1x1x8x8xbf16> to vector<8x8xbf16>
    %c0_3 = arith.constant 0 : index
    %c0_4 = arith.constant 0 : index
    %c0_5 = arith.constant 0 : index
    %c0_6 = arith.constant 0 : index
    %2 = vector.load %arg4[%c0_3, %c0_4, %c0_5, %c0_6] : memref<1x1x8x128xbf16, #tpu.memory_space<vmem>>, vector<1x1x8x128xbf16>
    %3 = vector.shape_cast %2 : vector<1x1x8x128xbf16> to vector<8x128xbf16>
    %cst = arith.constant dense<0.000000e+00> : vector<8x128xf32>
    %4 = tpu.matmul %1, %3, %cst {dimension_numbers = #tpu.dot_dimension_numbers<[1], [0], [0], [1], [0, 0, 1, 1], [], []>} : vector<8x8xbf16>, vector<8x128xbf16>, vector<8x128xf32> -> vector<8x128xf32>
    %c0_7 = arith.constant 0 : index
    %c0_8 = arith.constant 0 : index
    %c0_9 = arith.constant 0 : index
    %5 = vector.load %arg5[%c0_7, %c0_8, %c0_9] : memref<1x8x128xbf16, #tpu.memory_space<vmem>>, vector<1x8x128xbf16>
    %6 = vector.shape_cast %5 : vector<1x8x128xbf16> to vector<8x128xbf16>
    %7 = arith.extf %6 : vector<8x128xbf16> to vector<8x128xf32>
    %8 = arith.addf %4, %7 : vector<8x128xf32>
    %cst_10 = arith.constant dense<0xFF800000> : vector<8xf32>
    %9 = vector.multi_reduction <maximumf>, %8, %cst_10 [1] : vector<8x128xf32> to vector<8xf32>
    %10 = vector.shape_cast %9 : vector<8xf32> to vector<8x1xf32>
    %11 = vector.broadcast %10 : vector<8x1xf32> to vector<8x128xf32>
    %12 = arith.subf %8, %11 : vector<8x128xf32>
    %13 = math.exp %12 : vector<8x128xf32>
    %cst_11 = arith.constant dense<0.000000e+00> : vector<8xf32>
    %14 = vector.multi_reduction <add>, %13, %cst_11 [1] : vector<8x128xf32> to vector<8xf32>
    %15 = vector.shape_cast %14 : vector<8xf32> to vector<8x1xf32>
    %16 = tpu.reciprocal %15 {approx = true} : vector<8x1xf32> -> vector<8x1xf32>
    %17 = vector.broadcast %16 : vector<8x1xf32> to vector<8x128xf32>
    %18 = arith.mulf %13, %17 : vector<8x128xf32>
    %c0_12 = arith.constant 0 : index
    %c0_13 = arith.constant 0 : index
    %c0_14 = arith.constant 0 : index
    %c0_15 = arith.constant 0 : index
    %19 = vector.load %arg6[%c0_12, %c0_13, %c0_14, %c0_15] : memref<1x1x8x128xf32, #tpu.memory_space<vmem>>, vector<1x1x8x128xf32>
    %20 = vector.shape_cast %19 : vector<1x1x8x128xf32> to vector<8x128xf32>
    %21 = vector.shape_cast %18 : vector<8x128xf32> to vector<1x1x8x128xf32>
    tpu.vector_store %arg6[%c0_12, %c0_13, %c0_14, %c0_15], %21 {strides = array<i32>} : memref<1x1x8x128xf32, #tpu.memory_space<vmem>>, vector<1x1x8x128xf32>,
    return
  }
  func.func @transform_0(%arg0: i32, %arg1: i32, %arg2: i32) -> (i32, i32, i32, i32) {
    %c0_i32 = arith.constant 0 : i32
    %c0_i32_0 = arith.constant 0 : i32
    return %arg0, %arg2, %arg1, %c0_i32 : i32, i32, i32, i32
  }
  func.func @transform_1(%arg0: i32, %arg1: i32, %arg2: i32) -> (i32, i32, i32, i32) {
    %c0_i32 = arith.constant 0 : i32
    %c0_i32_0 = arith.constant 0 : i32
    %c0_i32_1 = arith.constant 0 : i32
    return %arg0, %arg2, %c0_i32, %c0_i32_0 : i32, i32, i32, i32
  }
  func.func @transform_2(%arg0: i32, %arg1: i32, %arg2: i32) -> (i32, i32, i32) {
    %c0_i32 = arith.constant 0 : i32
    %c0_i32_0 = arith.constant 0 : i32
    return %arg0, %arg1, %c0_i32 : i32, i32, i32
  }
  func.func @transform_3(%arg0: i32, %arg1: i32, %arg2: i32) -> (i32, i32, i32, i32) {
    %c0_i32 = arith.constant 0 : i32
    %c0_i32_0 = arith.constant 0 : i32
    return %arg0, %arg2, %arg1, %c0_i32 : i32, i32, i32, i32
  }
}

</mosaic_0001>

<llo_original>
// kernel: tpu_custom_call.1
$region0: #{tpu_custom_call.1}
  #allocation0 [shape = 'u32[]', space=smem, size = 0x4, offset = 0x4, fixed_abs, tag = 'smem constant byte address 0x4 - core index']
  #allocation1 [shape = 'u32[144,128]{1,0:T(1,128)}', space=vmem, size = 0x12000, scoped, tag = 'internal scratch']
  %s0 = inlined_call_operand.hbm [shape: bf16[2,4,8,8], index: 0, kind: input, shape index: {}]
  %s1 = inlined_call_operand.hbm [shape: bf16[2,4,8,128], index: 1, kind: input, shape index: {}]
  %s2 = inlined_call_operand.hbm [shape: bf16[2,8,128], index: 2, kind: input, shape index: {}]
  %s3 = inlined_call_operand.hbm [shape: f32[2,4,8,128], index: 3, kind: output, shape index: {}]
  %s4 = sld [smem:[#allocation0]]
  $region57: #{tpu_custom_call.1} parent=0
    _
  %s6 = ssub.s32 1, %s4
  %s7 = scalar_select 0, %s6, %s4
  $region1: #{tpu_custom_call.1} parent=0
    #allocation2 [shape = 'u8[4096]{0}', space=vmem, size = 0x1000, scoped, tag = 'input window, operand 0']
    #allocation3 [shape = 's32[2]{0}', space=sflag, size = 0x8, scoped, tag = 'scoped memory for tpu_custom_call.1']
    #allocation4 [shape = 's32[2]{0}', space=sflag, size = 0x8, scoped, tag = 'scoped memory for tpu_custom_call.1']
    #allocation5 [shape = 'u8[4096]{0}', space=vmem, size = 0x1000, scoped, tag = 'input window, operand 1']
    #allocation6 [shape = 's32[2]{0}', space=sflag, size = 0x8, scoped, tag = 'scoped memory for tpu_custom_call.1']
    #allocation7 [shape = 'u8[4096]{0}', space=vmem, size = 0x1000, scoped, tag = 'input window, operand 2']
    #allocation8 [shape = 'u8[8192]{0}', space=vmem, size = 0x2000, scoped, tag = 'output window, operand 0']
    %8 = vsyncpa [#allocation3], 0
    %s9 = scalar_lea.sflag [#allocation3], 1
    %10 = vsyncpa %s9, 0
    %11 = vsyncpa [#allocation6], 0
    %s12 = scalar_lea.sflag [#allocation6], 1
    %13 = vsyncpa %s12, 0
    %14 = vsyncpa [#allocation4], 0
    %s15 = scalar_lea.sflag [#allocation4], 1
    %16 = vsyncpa %s15, 0
    loop: start=0, step=1, limit=10
    $region2: #{tpu_custom_call.1} parent=1 // loop_pre_header
      _
    $region3: #{tpu_custom_call.1} parent=1 // loop_header
      %s18 = sphi 0, %s22
      %p19 = scmp.ge.s32.totalorder %s18, 10
      %s25 = sphi 0, %s44
      %s26 = sphi 0, %s40
      %s27 = sphi 0, %s36
      %s28 = sphi 0, %s25
      %s29 = sphi 0, %s26
      %s30 = sphi 0, %s27
      %s31 = sphi 0, %s28
      %s32 = sphi 0, %s29
      %s33 = sphi 0, %s30
      %s51 = sphi 0, %s53
      %s54 = sphi 0, %s51
      %s55 = sphi 0, %s54
      %s71 = sphi 0, %s55
      %s79 = sphi 0, %s81
      %s82 = sphi 0, %s79
      %s83 = sphi 0, %s82
      %s99 = sphi 0, %s83
      %s107 = sphi 0, %s109
      %s110 = sphi 0, %s107
      %s111 = sphi 0, %s110
      %s127 = sphi 0, %s111
      %s137 = sphi 0, %s139
      %s140 = sphi 0, %s137
      %s141 = sphi 0, %s140
      %s157 = sphi 0, %s141
    $region4: #{tpu_custom_call.1} parent=1 // loop_header_branch
      %21 = sbr.rel (%p19) target = $region8
    $region5: #{tpu_custom_call.1} parent=1 // loop_body
      %s23 = ssub.s32 %s18, 1
      %s24 = ssub.s32 %s18, 2
      %s34 = sadd.s32 1, %s27
      %p35 = scmp.ge.s32.totalorder %s34, 4
      %s36 = scalar_select %p35, 0, %s34
      %s37 = sadd.s32 1, %s26
      %s38 = scalar_select %p35, %s37, %s26
      %p39 = scmp.ge.s32.totalorder %s38, 1
      %s40 = scalar_select %p39, 0, %s38
      %s41 = sadd.s32 1, %s25
      %s42 = scalar_select %p39, %s41, %s25
      %p43 = scmp.ge.s32.totalorder %s42, 2
      %s44 = scalar_select %p43, 0, %s42
      %s45 = ssub.s32 %s25, %s44
      %s46 = ssub.s32 %s27, %s36
      %s47 = sor.u32 %s45, %s46
      %s48 = ssub.s32 %s26, %s40
      %s49 = sor.u32 %s47, %s48
      %p50 = scmp.eq.s32.totalorder %s49, 0
      %s52 = sadd.s32 %s51, 1
      %s53 = scalar_select %p50, %s51, %s52
      %p56 = pneg %p50
      %p57 = scmp.eq.s32.totalorder %s18, 7
      %p58 = por %p56, %p57
      %p59 = scmp.ne.s32.totalorder %s51, %s54
      %p60 = scmp.eq.s32.totalorder %s18, 0
      %p61 = por %p59, %p60
      %p62 = scmp.ne.s32.totalorder %s51, %s54
      %p63 = scmp.eq.s32.totalorder %s23, 7
      %p64 = por %p62, %p63
      %p65 = scmp.ne.s32.totalorder %s54, %s55
      %p66 = scmp.eq.s32.totalorder %s23, 0
      %p67 = por %p65, %p66
      %p68 = scmp.ne.s32.totalorder %s54, %s55
      %p69 = scmp.eq.s32.totalorder %s24, 7
      %p70 = por %p68, %p69
      %p72 = scmp.ne.s32.totalorder %s55, %s71
      %p73 = scmp.eq.s32.totalorder %s24, 0
      %p74 = por %p72, %p73
      %s75 = ssub.s32 %s25, %s44
      %s76 = ssub.s32 %s27, %s36
      %s77 = sor.u32 %s75, %s76
      %p78 = scmp.eq.s32.totalorder %s77, 0
      %s80 = sadd.s32 %s79, 1
      %s81 = scalar_select %p78, %s79, %s80
      %p84 = pneg %p78
      %p85 = scmp.eq.s32.totalorder %s18, 7
      %p86 = por %p84, %p85
      %p87 = scmp.ne.s32.totalorder %s79, %s82
      %p88 = scmp.eq.s32.totalorder %s18, 0
      %p89 = por %p87, %p88
      %p90 = scmp.ne.s32.totalorder %s79, %s82
      %p91 = scmp.eq.s32.totalorder %s23, 7
      %p92 = por %p90, %p91
      %p93 = scmp.ne.s32.totalorder %s82, %s83
      %p94 = scmp.eq.s32.totalorder %s23, 0
      %p95 = por %p93, %p94
      %p96 = scmp.ne.s32.totalorder %s82, %s83
      %p97 = scmp.eq.s32.totalorder %s24, 7
      %p98 = por %p96, %p97
      %p100 = scmp.ne.s32.totalorder %s83, %s99
      %p101 = scmp.eq.s32.totalorder %s24, 0
      %p102 = por %p100, %p101
      %s103 = ssub.s32 %s25, %s44
      %s104 = ssub.s32 %s26, %s40
      %s105 = sor.u32 %s103, %s104
      %p106 = scmp.eq.s32.totalorder %s105, 0
      %s108 = sadd.s32 %s107, 1
      %s109 = scalar_select %p106, %s107, %s108
      %p112 = pneg %p106
      %p113 = scmp.eq.s32.totalorder %s18, 7
      %p114 = por %p112, %p113
      %p115 = scmp.ne.s32.totalorder %s107, %s110
      %p116 = scmp.eq.s32.totalorder %s18, 0
      %p117 = por %p115, %p116
      %p118 = scmp.ne.s32.totalorder %s107, %s110
      %p119 = scmp.eq.s32.totalorder %s23, 7
      %p120 = por %p118, %p119
      %p121 = scmp.ne.s32.totalorder %s110, %s111
      %p122 = scmp.eq.s32.totalorder %s23, 0
      %p123 = por %p121, %p122
      %p124 = scmp.ne.s32.totalorder %s110, %s111
      %p125 = scmp.eq.s32.totalorder %s24, 7
      %p126 = por %p124, %p125
      %p128 = scmp.ne.s32.totalorder %s111, %s127
      %p129 = scmp.eq.s32.totalorder %s24, 0
      %p130 = por %p128, %p129
      %s131 = ssub.s32 %s25, %s44
      %s132 = ssub.s32 %s27, %s36
      %s133 = sor.u32 %s131, %s132
      %s134 = ssub.s32 %s26, %s40
      %s135 = sor.u32 %s133, %s134
      %p136 = scmp.eq.s32.totalorder %s135, 0
      %s138 = sadd.s32 %s137, 1
      %s139 = scalar_select %p136, %s137, %s138
      %p142 = pneg %p136
      %p143 = scmp.eq.s32.totalorder %s18, 7
      %p144 = por %p142, %p143
      %p145 = scmp.ne.s32.totalorder %s137, %s140
      %p146 = scmp.eq.s32.totalorder %s18, 0
      %p147 = por %p145, %p146
      %p148 = scmp.ne.s32.totalorder %s137, %s140
      %p149 = scmp.eq.s32.totalorder %s23, 7
      %p150 = por %p148, %p149
      %p151 = scmp.ne.s32.totalorder %s140, %s141
      %p152 = scmp.eq.s32.totalorder %s23, 0
      %p153 = por %p151, %p152
      %p154 = scmp.ne.s32.totalorder %s140, %s141
      %p155 = scmp.eq.s32.totalorder %s24, 7
      %p156 = por %p154, %p155
      %p158 = scmp.ne.s32.totalorder %s141, %s157
      %p159 = scmp.eq.s32.totalorder %s24, 0
      %p160 = por %p158, %p159
      %p161 = scmp.le.s32.totalorder 1, %s18
      %p162 = scmp.lt.s32.totalorder %s18, 9
      %p163 = pnand %p161, %p162
      %p164 = pneg %p163
      // Predicated region
      $region9: #{tpu_custom_call.1} parent=5 // pred_check
        _
      $region10: #{tpu_custom_call.1} parent=5 // pred_check_branch
        %166 = sbr.rel (%p163) target = $region12
      $region11: #{tpu_custom_call.1} parent=5 // pred_region
        %s167 = ssub.s32 %s18, 1
      $region12: #{tpu_custom_call.1} parent=5 // pred_fallthru
        _
      %p168 = scmp.lt.s32.totalorder %s18, 8
      // Predicated region
      $region13: #{tpu_custom_call.1} parent=5 // pred_check
        %p169 = pneg %p168
      $region14: #{tpu_custom_call.1} parent=5 // pred_check_branch
        %171 = sbr.rel (%p169) target = $region16
      $region15: #{tpu_custom_call.1} parent=5 // pred_region
        // Predicated region
        $region17: #{tpu_custom_call.1} parent=15 // pred_check
          %p172 = pneg %p61
        $region18: #{tpu_custom_call.1} parent=15 // pred_check_branch
          %174 = sbr.rel (%p172) target = $region20
        $region19: #{tpu_custom_call.1} parent=15 // pred_region
          %s175 = sand.u32 %s51, 1
          %s176 = scalar_lea.sflag [#allocation3], %s175
          %s177 = sand.u32 %s51, 1
          %s178 = smul.addr %s177, 4
          %s179 = scalar_lea.vmem [#allocation2], %s178
          %s181 = ssub.s32 64, 64
          %182 = vsyncadd %s176, %s181
          %s183 = sadd.s32 %s26, %s27
          %s184 = smul.addr %s25, 4
          %s185 = sadd.s32 %s183, %s184
          %s186 = smul.addr %s185, 64
          %s187 = scalar_lea.hbm %s0, %s186
          %s189 = sshll.u32 %s179, 4
          %s190 = int_to_ptr.vmem [resolvable:$true] %s189
          %192 = dma.hbm_to_vmem [thread:$0]  %s187, 64, %s190, %s176
        $region20: #{tpu_custom_call.1} parent=15 // pred_fallthru
          _
        // Predicated region
        $region21: #{tpu_custom_call.1} parent=15 // pred_check
          %p193 = pneg %p89
        $region22: #{tpu_custom_call.1} parent=15 // pred_check_branch
          %195 = sbr.rel (%p193) target = $region24
        $region23: #{tpu_custom_call.1} parent=15 // pred_region
          %s196 = sand.u32 %s18, 1
          %s197 = scalar_lea.sflag [#allocation6], %s196
          %s198 = sand.u32 %s79, 1
          %s199 = smul.addr %s198, 4
          %s200 = scalar_lea.vmem [#allocation5], %s199
          %s202 = ssub.s32 64, 64
          %203 = vsyncadd %s197, %s202
          %s204 = smul.addr %s25, 4
          %s205 = sadd.s32 %s27, %s204
          %s206 = smul.addr %s205, 64
          %s207 = scalar_lea.hbm %s1, %s206
          %s209 = sshll.u32 %s200, 4
          %s210 = int_to_ptr.vmem [resolvable:$true] %s209
          %212 = dma.hbm_to_vmem [thread:$0]  %s207, 64, %s210, %s197
        $region24: #{tpu_custom_call.1} parent=15 // pred_fallthru
          _
        // Predicated region
        $region25: #{tpu_custom_call.1} parent=15 // pred_check
          %p213 = pneg %p117
        $region26: #{tpu_custom_call.1} parent=15 // pred_check_branch
          %215 = sbr.rel (%p213) target = $region28
        $region27: #{tpu_custom_call.1} parent=15 // pred_region
          %s216 = sand.u32 %s18, 1
          %s217 = scalar_lea.sflag [#allocation6], %s216
          %s218 = sand.u32 %s107, 1
          %s219 = smul.addr %s218, 4
          %s220 = scalar_lea.vmem [#allocation7], %s219
          %s222 = ssub.s32 64, 64
          %223 = vsyncadd %s217, %s222
          %s224 = sadd.s32 %s26, %s25
          %s225 = smul.addr %s224, 64
          %s226 = scalar_lea.hbm %s2, %s225
          %s228 = sshll.u32 %s220, 4
          %s229 = int_to_ptr.vmem [resolvable:$true] %s228
          %231 = dma.hbm_to_vmem [thread:$0]  %s226, 64, %s229, %s217
        $region28: #{tpu_custom_call.1} parent=15 // pred_fallthru
          _
      $region16: #{tpu_custom_call.1} parent=5 // pred_fallthru
        _
      %p232 = scmp.le.s32.totalorder 1, %s18
      %p233 = scmp.lt.s32.totalorder %s18, 9
      %p234 = pnand %p232, %p233
      %p235 = pneg %p234
      // Predicated region
      $region29: #{tpu_custom_call.1} parent=5 // pred_check
        _
      $region30: #{tpu_custom_call.1} parent=5 // pred_check_branch
        %237 = sbr.rel (%p234) target = $region32
      $region31: #{tpu_custom_call.1} parent=5 // pred_region
        %s238 = ssub.s32 %s18, 1
        %s239 = sand.u32 %s54, 1
        %s240 = scalar_lea.sflag [#allocation3], %s239
        %s241 = sand.u32 %s54, 1
        %s242 = smul.addr %s241, 4
        %s243 = scalar_lea.vmem [#allocation2], %s242
        // Predicated region
        $region33: #{tpu_custom_call.1} parent=31 // pred_check
          %p244 = pneg %p67
        $region34: #{tpu_custom_call.1} parent=31 // pred_check_branch
          %246 = sbr.rel (%p244) target = $region36
        $region35: #{tpu_custom_call.1} parent=31 // pred_region
          %247 = dma.done %s240, 64
        $region36: #{tpu_custom_call.1} parent=31 // pred_fallthru
          _
        %s248 = sand.u32 %s23, 1
        %s249 = scalar_lea.sflag [#allocation6], %s248
        %s250 = sand.u32 %s82, 1
        %s251 = smul.addr %s250, 4
        %s252 = scalar_lea.vmem [#allocation5], %s251
        // Predicated region
        $region37: #{tpu_custom_call.1} parent=31 // pred_check
          %p253 = pneg %p95
        $region38: #{tpu_custom_call.1} parent=31 // pred_check_branch
          %255 = sbr.rel (%p253) target = $region40
        $region39: #{tpu_custom_call.1} parent=31 // pred_region
          %256 = dma.done %s249, 64
        $region40: #{tpu_custom_call.1} parent=31 // pred_fallthru
          _
        %s257 = sand.u32 %s23, 1
        %s258 = scalar_lea.sflag [#allocation6], %s257
        %s259 = sand.u32 %s110, 1
        %s260 = smul.addr %s259, 4
        %s261 = scalar_lea.vmem [#allocation7], %s260
        // Predicated region
        $region41: #{tpu_custom_call.1} parent=31 // pred_check
          %p262 = pneg %p123
        $region42: #{tpu_custom_call.1} parent=31 // pred_check_branch
          %264 = sbr.rel (%p262) target = $region44
        $region43: #{tpu_custom_call.1} parent=31 // pred_region
          %265 = dma.done %s258, 64
        $region44: #{tpu_custom_call.1} parent=31 // pred_fallthru
          _
        %s266 = sand.u32 %s54, 1
        %s267 = scalar_lea.sflag [#allocation3], %s266
        %s268 = sand.u32 %s54, 1
        %s269 = smul.addr %s268, 4
        %s270 = scalar_lea.vmem [#allocation2], %s269
        %p271 = pneg %p67
        %p272 = pneg %p64
        %s273 = sand.u32 %s23, 1
        %s274 = scalar_lea.sflag [#allocation6], %s273
        %s275 = sand.u32 %s82, 1
        %s276 = smul.addr %s275, 4
        %s277 = scalar_lea.vmem [#allocation5], %s276
        %p278 = pneg %p95
        %p279 = pneg %p92
        %s280 = sand.u32 %s23, 1
        %s281 = scalar_lea.sflag [#allocation6], %s280
        %s282 = sand.u32 %s110, 1
        %s283 = smul.addr %s282, 4
        %s284 = scalar_lea.vmem [#allocation7], %s283
        %p285 = pneg %p123
        %p286 = pneg %p120
        %p287 = pneg %p153
        %p288 = pneg %p150
        %s289 = sand.u32 %s140, 1
        %s290 = scalar_lea.sflag [#allocation4], %s289
        %s291 = sand.u32 %s140, 1
        %s292 = smul.addr %s291, 8
        %s293 = scalar_lea.vmem [#allocation8], %s292
        %v295 = vld [vmem:[%s243] sm:$0xf]
        %v296 = vld [vmem:[%s252] sm:$0xf]
        %v297 = vld [vmem:[%s261] sm:$0xf]
        %v298 = vunpack.c.l.bf16 %v297
        %vm299 = vcmask 64512
        %v301 = vsel %vm299, %v295, 0
        %vm303 = vcmask 1043456
        %v305 = vsel %vm303, %v296, 0
        %307 = vmatprep.subr.bf16.mxu0 0
        %308 = vmatpush1.bf16.msra.mxu0 %v305
        %309 = vmatprep.subr.bf16.mxu0 0
        %310 = vmatpush1.bf16.msra.mxu0 0
        %311 = vmatprep.subr.bf16.mxu0 0
        %312 = vmatpush1.bf16.msra.mxu0 0
        %313 = vmatprep.subr.bf16.mxu0 0
        %314 = vmatpush1.bf16.msra.mxu0 0
        %315 = vmatprep.subr.bf16.mxu0 0
        %316 = vmatpush1.bf16.msra.mxu0 0
        %317 = vmatprep.subr.bf16.mxu0 0
        %318 = vmatpush1.bf16.msra.mxu0 0
        %319 = vmatprep.subr.bf16.mxu0 0
        %320 = vmatpush1.bf16.msra.mxu0 0
        %321 = vmatprep.subr.bf16.mxu0 0
        %322 = vmatpush1.bf16.msra.mxu0 0
        %323 = vmatprep.subr.bf16.mxu0 0
        %324 = vmatpush1.bf16.msra.mxu0 0
        %325 = vmatprep.subr.bf16.mxu0 0
        %326 = vmatpush1.bf16.msra.mxu0 0
        %327 = vmatprep.subr.bf16.mxu0 0
        %328 = vmatpush1.bf16.msra.mxu0 0
        %329 = vmatprep.subr.bf16.mxu0 0
        %330 = vmatpush1.bf16.msra.mxu0 0
        %331 = vmatprep.subr.bf16.mxu0 0
        %332 = vmatpush1.bf16.msra.mxu0 0
        %333 = vmatprep.subr.bf16.mxu0 0
        %334 = vmatpush1.bf16.msra.mxu0 0
        %335 = vmatprep.subr.bf16.mxu0 0
        %336 = vmatpush1.bf16.msra.mxu0 0
        %337 = vmatprep.subr.bf16.mxu0 0
        %338 = vmatpush1.bf16.msra.mxu0 0
        %339 = vmatprep.mubr.bf16.mxu0 0
        %340 = vmatmul.mubr.bf16.gmra.mrb[0].mxu0 %v301
        %v341 = vpop.f32.mrb[0].mxu0
        %v342 = vadd.f32 %v298, %v341
        %v343 = vpop.f32.mrb[0].mxu0
        %v344 = vpop.f32.mrb[0].mxu0
        %v345 = vpop.f32.mrb[0].mxu0
        %346 = vdwg.mxu0
        %347 = vmax.xlane.f32.xlu0 %v342
        %v348 = vpop.xlane.xlu0 %347
        %v349 = vsub.f32 %v342, %v348
        %v350 = vmul.f32 %v349, 1.442695
        %v351 = vpow.pop %v350
        %352 = vadd.xlane.f32.xlu0 %v351
        %v353 = vpop.xlane.xlu0 %352
        %v354 = vrcp.pop %v353
        %v355 = vmul.f32 %v351, %v354
        %356 = vst [vmem:[%s293] sm:$0xff] %v355
        %s357 = sand.u32 %s140, 1
        %s358 = scalar_lea.sflag [#allocation4], %s357
        %s359 = sand.u32 %s140, 1
        %s360 = smul.addr %s359, 8
        %s361 = scalar_lea.vmem [#allocation8], %s360
        // Predicated region
        $region45: #{tpu_custom_call.1} parent=31 // pred_check
          %p362 = pneg %p150
        $region46: #{tpu_custom_call.1} parent=31 // pred_check_branch
          %364 = sbr.rel (%p362) target = $region48
        $region47: #{tpu_custom_call.1} parent=31 // pred_region
          %s366 = ssub.s32 128, 128
          %367 = vsyncadd %s358, %s366
          %s368 = sadd.s32 %s29, %s30
          %s369 = smul.addr %s28, 4
          %s370 = sadd.s32 %s368, %s369
          %s371 = smul.addr %s370, 128
          %s372 = scalar_lea.hbm %s3, %s371
          %s374 = sshll.u32 %s361, 4
          %s375 = int_to_ptr.vmem [resolvable:$true] %s374
          %377 = dma.vmem_to_hbm [thread:$0]  %s375, 128, %s372, %s358
        $region48: #{tpu_custom_call.1} parent=31 // pred_fallthru
          _
      $region32: #{tpu_custom_call.1} parent=5 // pred_fallthru
        _
      %p378 = scmp.le.s32.totalorder 2, %s18
      // Predicated region
      $region49: #{tpu_custom_call.1} parent=5 // pred_check
        %p379 = pneg %p378
      $region50: #{tpu_custom_call.1} parent=5 // pred_check_branch
        %381 = sbr.rel (%p379) target = $region52
      $region51: #{tpu_custom_call.1} parent=5 // pred_region
        %s382 = ssub.s32 %s18, 2
        // Predicated region
        $region53: #{tpu_custom_call.1} parent=51 // pred_check
          %p383 = pneg %p156
        $region54: #{tpu_custom_call.1} parent=51 // pred_check_branch
          %385 = sbr.rel (%p383) target = $region56
        $region55: #{tpu_custom_call.1} parent=51 // pred_region
          %s386 = sand.u32 %s141, 1
          %s387 = scalar_lea.sflag [#allocation4], %s386
          %s388 = sand.u32 %s141, 1
          %s389 = smul.addr %s388, 8
          %s390 = scalar_lea.vmem [#allocation8], %s389
          %391 = dma.done %s387, 128
        $region56: #{tpu_custom_call.1} parent=51 // pred_fallthru
          _
      $region52: #{tpu_custom_call.1} parent=5 // pred_fallthru
        _
    $region6: #{tpu_custom_call.1} parent=1 // loop_footer
      %s22 = sadd.s32 1, %s18
    $region7: #{tpu_custom_call.1} parent=1 // loop_footer_branch
      %17 = sbr.rel target = $region3
    $region8: #{tpu_custom_call.1} parent=1 // loop_exit
      _
    %392 = vsyncpa [#allocation3], 1
    %s393 = scalar_lea.sflag [#allocation3], 1
    %394 = vsyncpa %s393, 1
    %395 = vsyncpa [#allocation6], 1
    %s396 = scalar_lea.sflag [#allocation6], 1
    %397 = vsyncpa %s396, 1
    %398 = vsyncpa [#allocation4], 1
    %s399 = scalar_lea.sflag [#allocation4], 1
    %400 = vsyncpa %s399, 1

</llo_original>
